<compile_context>
chip_gen: v7x
topology: tpu7x:2x2x1
jax: 0.10.0
libtpu: 0.0.40
codegen_flags: <defaults>
</compile_context>

<pallas_src>
import math
import functools

import jax
import jax.numpy as jnp
from jax import lax
from jax.experimental import pallas as pl
from jax.experimental.pallas import tpu as pltpu


# ---------------------------------------------------------------------------
# Helpers
# ---------------------------------------------------------------------------
def _pick_tile(dim, preferred):
    """Largest preferred tile that evenly divides `dim`, else the full dim."""
    for t in preferred:
        if dim % t == 0:
            return t
    return dim


# ---------------------------------------------------------------------------
# Tiled linear (matmul + bias) kernel
# ---------------------------------------------------------------------------
def _linear_kernel(x_ref, w_ref, b_ref, o_ref, acc_ref):
    k = pl.program_id(2)

    @pl.when(k == 0)
    def _init():
        # Fold the bias add into the f32 accumulator init.
        acc_ref[...] = jnp.broadcast_to(
            b_ref[...].astype(jnp.float32), acc_ref.shape
        )

    acc_ref[...] += jnp.dot(
        x_ref[...], w_ref[...], preferred_element_type=jnp.float32
    )

    @pl.when(k == pl.num_programs(2) - 1)
    def _store():
        o_ref[...] = acc_ref[...].astype(o_ref.dtype)


def _pallas_linear(x2d, w, b):
    """x2d: (M, K), w: (K, N), b: (N,) -> (M, N), accumulated in f32."""
    M, K = x2d.shape
    N = w.shape[1]
    tm = _pick_tile(M, (256, 128))
    tn = _pick_tile(N, (256, 128))
    tk = _pick_tile(K, (512, 256, 128))
    b2 = b.reshape(1, N).astype(jnp.float32)

    return pl.pallas_call(
        _linear_kernel,
        out_shape=jax.ShapeDtypeStruct((M, N), x2d.dtype),
        grid=(M // tm, N // tn, K // tk),
        in_specs=[
            pl.BlockSpec((tm, tk), lambda i, j, k: (i, k)),
            pl.BlockSpec((tk, tn), lambda i, j, k: (k, j)),
            pl.BlockSpec((1, tn), lambda i, j, k: (0, j)),
        ],
        out_specs=pl.BlockSpec((tm, tn), lambda i, j, k: (i, j)),
        scratch_shapes=[pltpu.VMEM((tm, tn), jnp.float32)],
        compiler_params=pltpu.CompilerParams(
            dimension_semantics=("parallel", "parallel", "arbitrary"),
            vmem_limit_bytes=32 * 1024 * 1024,
        ),
    )(x2d, w, b2)


# ---------------------------------------------------------------------------
# Flash-style causal attention kernel (grid = (B, H, q_blocks, kv_blocks))
# ---------------------------------------------------------------------------
def _attn_kernel(q_ref, k_ref, v_ref, o_ref, m_sc, l_sc, acc_sc, *, scale, tq, tk):
    qi = pl.program_id(2)
    ki = pl.program_id(3)
    nk = pl.num_programs(3)

    @pl.when(ki == 0)
    def _init():
        m_sc[...] = jnp.full_like(m_sc, -1e30)
        l_sc[...] = jnp.zeros_like(l_sc)
        acc_sc[...] = jnp.zeros_like(acc_sc)

    q_row0 = qi * tq
    k_col0 = ki * tk
    # Block-level causality: kv block is needed iff it has >=1 unmasked element.
    needed = k_col0 <= q_row0 + (tq - 1)
    # Block straddles the diagonal iff it contains masked elements -> needs iota mask.
    straddle = k_col0 + (tk - 1) > q_row0

    def _scores():
        # Fold the softmax scale into the (tq, D) q tile (cheaper than the (tq, tk)
        # score tile); contract last dims directly (no explicit k.T / XLU transpose).
        qs = q_ref[...] * jnp.asarray(scale, q_ref.dtype)
        return lax.dot_general(
            qs, k_ref[...],
            dimension_numbers=(((1,), (1,)), ((), ())),
            preferred_element_type=jnp.float32,
        )

    def _flash_update(s):
        m_prev = m_sc[...]
        m_new = jnp.maximum(m_prev, jnp.max(s, axis=-1, keepdims=True))
        alpha = jnp.exp(m_prev - m_new)
        p = jnp.exp(s - m_new)
        l_sc[...] = alpha * l_sc[...] + jnp.sum(p, axis=-1, keepdims=True)
        acc_sc[...] = alpha * acc_sc[...] + jnp.dot(
            p.astype(v_ref.dtype), v_ref[...], preferred_element_type=jnp.float32
        )
        m_sc[...] = m_new

    @pl.when(jnp.logical_and(needed, jnp.logical_not(straddle)))
    def _below_diag():  # fully unmasked kv block: no select / iota work
        _flash_update(_scores())

    @pl.when(jnp.logical_and(needed, straddle))
    def _on_diag():  # diagonal-straddling block: apply causal mask
        s = _scores()
        row = q_row0 + lax.broadcasted_iota(jnp.int32, (tq, tk), 0)
        col = k_col0 + lax.broadcasted_iota(jnp.int32, (tq, tk), 1)
        s = jnp.where(col <= row, s, -1e30)  # finite: padded rows never produce NaN
        _flash_update(s)

    @pl.when(ki == nk - 1)
    def _finalize():
        # approx=True would push the divide onto the EUP slot; exact here for the check.
        inv_l = pl.reciprocal(l_sc[...], approx=False)
        o_ref[...] = (acc_sc[...] * inv_l).astype(o_ref.dtype)


def _pallas_causal_attention(q, k, v):
    """q, k, v: (B, H, T, D) -> (B, H, T, D) causal attention, flash-tiled over T."""
    B, H, T, D = q.shape
    scale = 1.0 / math.sqrt(D)
    tq = _pick_tile(T, (128,))
    tk = tq
    nq, nk = T // tq, T // tk

    kernel = functools.partial(_attn_kernel, scale=scale, tq=tq, tk=tk)
    q_spec = pl.BlockSpec((None, None, tq, D), lambda b, h, qi, ki: (b, h, qi, 0))
    kv_spec = pl.BlockSpec((None, None, tk, D), lambda b, h, qi, ki: (b, h, ki, 0))
    o_spec = pl.BlockSpec((None, None, tq, D), lambda b, h, qi, ki: (b, h, qi, 0))

    return pl.pallas_call(
        kernel,
        out_shape=jax.ShapeDtypeStruct((B, H, T, D), q.dtype),
        grid=(B, H, nq, nk),
        in_specs=[q_spec, kv_spec, kv_spec],
        out_specs=o_spec,
        scratch_shapes=[
            pltpu.VMEM((tq, 1), jnp.float32),   # running max
            pltpu.VMEM((tq, 1), jnp.float32),   # running sum
            pltpu.VMEM((tq, D), jnp.float32),   # output accumulator
        ],
        compiler_params=pltpu.CompilerParams(
            dimension_semantics=("parallel", "parallel", "parallel", "arbitrary"),
            vmem_limit_bytes=32 * 1024 * 1024,
        ),
    )(q, k, v)


# ---------------------------------------------------------------------------
# Module forward
# ---------------------------------------------------------------------------
def causal_self_attention(x, params, n_head, compute_dtype=None):
    """Forward pass equivalent to CasualSelfAttention.forward.

    x: (B, T, C); params: w_attn (C, 3C), b_attn (3C,), w_proj (C, C), b_proj (C,)
    (weights stored as the matmul-friendly (in, out) transpose of nn.Linear.weight).
    """
    B, T, C = x.shape
    D = C // n_head
    dt = compute_dtype if compute_dtype is not None else x.dtype

    # 1. qkv projection: flatten batch into the matmul M dimension.
    qkv = _pallas_linear(
        x.astype(dt).reshape(B * T, C),
        params["w_attn"].astype(dt),
        params["b_attn"],
    ).reshape(B, T, 3 * C)

    q, k, v = jnp.split(qkv, 3, axis=-1)
    q = q.reshape(B, T, n_head, D).transpose(0, 2, 1, 3)
    k = k.reshape(B, T, n_head, D).transpose(0, 2, 1, 3)
    v = v.reshape(B, T, n_head, D).transpose(0, 2, 1, 3)

    # 2. causal flash attention per (batch, head, q-block).
    out = _pallas_causal_attention(q, k, v)          # (B, H, T, D)
    out = out.transpose(0, 2, 1, 3).reshape(B * T, C)

    # 3. output projection.
    out = _pallas_linear(out, params["w_proj"].astype(dt), params["b_proj"])
    return out.reshape(B, T, C)


# ---------------------------------------------------------------------------
# Reference (pure JAX) for sanity checking
# ---------------------------------------------------------------------------
def _reference(x, params, n_head):
    B, T, C = x.shape
    D = C // n_head
    comb = x @ params["w_attn"] + params["b_attn"]
    q, k, v = jnp.split(comb, 3, axis=-1)
    q = q.reshape(B, T, n_head, D).transpose(0, 2, 1, 3)
    k = k.reshape(B, T, n_head, D).transpose(0, 2, 1, 3)
    v = v.reshape(B, T, n_head, D).transpose(0, 2, 1, 3)
    s = jnp.einsum("bhqd,bhkd->bhqk", q, k) / math.sqrt(D)
    mask = jnp.tril(jnp.ones((T, T), dtype=bool))
    s = jnp.where(mask, s, -jnp.inf)
    p = jax.nn.softmax(s, axis=-1)
    o = jnp.einsum("bhqk,bhkd->bhqd", p, v)
    o = o.transpose(0, 2, 1, 3).reshape(B, T, C)
    return o @ params["w_proj"] + params["b_proj"]


# ---------------------------------------------------------------------------
# Main
# ---------------------------------------------------------------------------
if __name__ == "__main__":
    B, T, C, n_head = 2, 8, 32, 4  # head_dim = 8

    key = jax.random.PRNGKey(0)
    kx, k1, k2, k3, k4 = jax.random.split(key, 5)

    x = jax.random.normal(kx, (B, T, C), dtype=jnp.float32)
    params = {
        "w_attn": 0.02 * jax.random.normal(k1, (C, 3 * C), dtype=jnp.float32),
        "b_attn": 0.02 * jax.random.normal(k2, (3 * C,), dtype=jnp.float32),
        "w_proj": 0.02 * jax.random.normal(k3, (C, C), dtype=jnp.float32),
        "b_proj": 0.02 * jax.random.normal(k4, (C,), dtype=jnp.float32),
    }

    out = causal_self_attention(x, params, n_head)
    out = jax.block_until_ready(out)

    ref = _reference(x, params, n_head)
    assert out.shape == (B, T, C)
    assert jnp.allclose(out, ref, atol=1e-4, rtol=1e-4), "mismatch vs reference"

    print("KERNEL_OK")
</pallas_src>

<mosaic_0001>
module attributes {stable_mosaic.version = 11 : i64} {
  func.func @_linear_kernel(%arg0: i32, %arg1: i32, %arg2: i32, %arg3: memref<16x32xf32, #tpu.memory_space<vmem>>, %arg4: memref<32x96xf32, #tpu.memory_space<vmem>>, %arg5: memref<1x96xf32, #tpu.memory_space<vmem>>, %arg6: memref<16x96xf32, #tpu.memory_space<vmem>>, %arg7: memref<16x96xf32, #tpu.memory_space<vmem>>) attributes {dimension_semantics = [#tpu.dimension_semantics<parallel>, #tpu.dimension_semantics<parallel>, #tpu.dimension_semantics<arbitrary>], iteration_bounds = array<i64: 1, 1, 1>, scalar_prefetch = 0 : i64, scratch_operands = 1 : i64, tpu.core_type = #tpu.core_type<tc>, window_params = [{transform_indices = @transform_0, window_bounds = array<i64: 16, 32>}, {transform_indices = @transform_1, window_bounds = array<i64: 32, 96>}, {transform_indices = @transform_2, window_bounds = array<i64: 1, 96>}, {transform_indices = @transform_3, window_bounds = array<i64: 16, 96>}]} {
    %c0_i32 = arith.constant 0 : i32
    %0 = arith.cmpi eq, %arg2, %c0_i32 : i32
    %1 = arith.extui %0 : i1 to i32
    %c0_i32_0 = arith.constant 0 : i32
    %2 = arith.cmpi ne, %1, %c0_i32_0 : i32
    scf.if %2 {
      %c0_10 = arith.constant 0 : index
      %c0_11 = arith.constant 0 : index
      %12 = vector.load %arg5[%c0_10, %c0_11] : memref<1x96xf32, #tpu.memory_space<vmem>>, vector<1x96xf32>
      %13 = vector.shape_cast %12 : vector<1x96xf32> to vector<1x96xf32>
      %14 = vector.broadcast %13 : vector<1x96xf32> to vector<16x96xf32>
      %c0_12 = arith.constant 0 : index
      %c0_13 = arith.constant 0 : index
      %15 = vector.load %arg7[%c0_12, %c0_13] : memref<16x96xf32, #tpu.memory_space<vmem>>, vector<16x96xf32>
      tpu.vector_store %arg7[%c0_12, %c0_13], %14 {strides = array<i32>} : memref<16x96xf32, #tpu.memory_space<vmem>>, vector<16x96xf32>,
    } else {
    }
    %c0 = arith.constant 0 : index
    %c0_1 = arith.constant 0 : index
    %3 = vector.load %arg7[%c0, %c0_1] : memref<16x96xf32, #tpu.memory_space<vmem>>, vector<16x96xf32>
    %c0_2 = arith.constant 0 : index
    %c0_3 = arith.constant 0 : index
    %4 = vector.load %arg3[%c0_2, %c0_3] : memref<16x32xf32, #tpu.memory_space<vmem>>, vector<16x32xf32>
    %c0_4 = arith.constant 0 : index
    %c0_5 = arith.constant 0 : index
    %5 = vector.load %arg4[%c0_4, %c0_5] : memref<32x96xf32, #tpu.memory_space<vmem>>, vector<32x96xf32>
    %cst = arith.constant dense<0.000000e+00> : vector<16x96xf32>
    %6 = tpu.matmul %4, %5, %cst {dimension_numbers = #tpu.dot_dimension_numbers<[1], [0], [0], [1], [0, 0, 1, 1], [], []>} : vector<16x32xf32>, vector<32x96xf32>, vector<16x96xf32> -> vector<16x96xf32>
    %7 = arith.addf %3, %6 : vector<16x96xf32>
    %c0_6 = arith.constant 0 : index
    %c0_7 = arith.constant 0 : index
    %8 = vector.load %arg7[%c0_6, %c0_7] : memref<16x96xf32, #tpu.memory_space<vmem>>, vector<16x96xf32>
    tpu.vector_store %arg7[%c0_6, %c0_7], %7 {strides = array<i32>} : memref<16x96xf32, #tpu.memory_space<vmem>>, vector<16x96xf32>,
    %c0_i32_8 = arith.constant 0 : i32
    %9 = arith.cmpi eq, %arg2, %c0_i32_8 : i32
    %10 = arith.extui %9 : i1 to i32
    %c0_i32_9 = arith.constant 0 : i32
    %11 = arith.cmpi ne, %10, %c0_i32_9 : i32
    scf.if %11 {
      %c0_10 = arith.constant 0 : index
      %c0_11 = arith.constant 0 : index
      %12 = vector.load %arg7[%c0_10, %c0_11] : memref<16x96xf32, #tpu.memory_space<vmem>>, vector<16x96xf32>
      %c0_12 = arith.constant 0 : index
      %c0_13 = arith.constant 0 : index
      %13 = vector.load %arg6[%c0_12, %c0_13] : memref<16x96xf32, #tpu.memory_space<vmem>>, vector<16x96xf32>
      tpu.vector_store %arg6[%c0_12, %c0_13], %12 {strides = array<i32>} : memref<16x96xf32, #tpu.memory_space<vmem>>, vector<16x96xf32>,
    } else {
    }
    return
  }
  func.func @transform_0(%arg0: i32, %arg1: i32, %arg2: i32) -> (i32, i32) {
    %c0_i32 = arith.constant 0 : i32
    return %arg0, %arg2 : i32, i32
  }
  func.func @transform_1(%arg0: i32, %arg1: i32, %arg2: i32) -> (i32, i32) {
    %c0_i32 = arith.constant 0 : i32
    return %arg2, %arg1 : i32, i32
  }
  func.func @transform_2(%arg0: i32, %arg1: i32, %arg2: i32) -> (i32, i32) {
    %c0_i32 = arith.constant 0 : i32
    %c0_i32_0 = arith.constant 0 : i32
    return %c0_i32, %arg1 : i32, i32
  }
  func.func @transform_3(%arg0: i32, %arg1: i32, %arg2: i32) -> (i32, i32) {
    %c0_i32 = arith.constant 0 : i32
    return %arg0, %arg1 : i32, i32
  }
}

</mosaic_0001>

<llo_original>
// kernel: tpu_custom_call.1
$region0: #{tpu_custom_call.1}
  #allocation0 [shape = 'u32[]', space=smem, size = 0x4, offset = 0x4, fixed_abs, tag = 'smem constant byte address 0x4 - core index']
  #allocation1 [shape = 'u32[144,128]{1,0:T(1,128)}', space=vmem, size = 0x12000, scoped, tag = 'internal scratch']
  #allocation2 [shape = 'f32[16,96]{1,0:T(8,128)}', space=vmem, size = 0x2000, scoped, tag = 'scratch operand']
  %s0 = inlined_call_operand.hbm [shape: f32[16,32], index: 0, kind: input, shape index: {}]
  %s1 = inlined_call_operand.hbm [shape: f32[32,96], index: 1, kind: input, shape index: {}]
  %s2 = inlined_call_operand.vmem [shape: f32[1,96], index: 2, kind: input, shape index: {}]
  %s3 = inlined_call_operand.hbm [shape: f32[16,96], index: 3, kind: output, shape index: {}]
  %s4 = sld [smem:[#allocation0]]
  $region38: #{tpu_custom_call.1} parent=0
    _
  %s6 = ssub.s32 1, %s4
  %s7 = scalar_select 0, %s6, %s4
  $region1: #{tpu_custom_call.1} parent=0
    #allocation3 [shape = 'u8[8192]{0}', space=vmem, size = 0x2000, scoped, tag = 'input window, operand 0, single buffered']
    #allocation4 [shape = 's32[1]{0}', space=sflag, size = 0x4, scoped, tag = 'scoped memory for tpu_custom_call.1']
    #allocation5 [shape = 's32[1]{0}', space=sflag, size = 0x4, scoped, tag = 'scoped memory for tpu_custom_call.1']
    #allocation6 [shape = 'u8[16384]{0}', space=vmem, size = 0x4000, scoped, tag = 'input window, operand 1, single buffered']
    #allocation7 [shape = 's32[1]{0}', space=sflag, size = 0x4, scoped, tag = 'scoped memory for tpu_custom_call.1']
    #allocation8 [shape = 'u8[8192]{0}', space=vmem, size = 0x2000, scoped, tag = 'output window, operand 0, single buffered']
    %8 = vsyncpa [#allocation4], 0
    %9 = vsyncpa [#allocation7], 0
    %10 = vsyncpa [#allocation5], 0
    // Predicated region
    $region2: #{tpu_custom_call.1} parent=1 // pred_check
      _
    $region3: #{tpu_custom_call.1} parent=1 // pred_check_branch
      %12 = sbr.rel (0) target = $region5
    $region4: #{tpu_custom_call.1} parent=1 // pred_region
      %s14 = ssub.s32 256, 256
      %15 = vsyncadd [#allocation4], %s14
      %s16 = sshll.u32 [#allocation3], 4
      %s17 = int_to_ptr.vmem [resolvable:$true] %s16
      %22 = dma.hbm_to_vmem [thread:$0]  %s0, 256, %s17, [#allocation4], 128, 128, 8
    $region5: #{tpu_custom_call.1} parent=1 // pred_fallthru
      _
    // Predicated region
    $region6: #{tpu_custom_call.1} parent=1 // pred_check
      _
    $region7: #{tpu_custom_call.1} parent=1 // pred_check_branch
      %24 = sbr.rel (0) target = $region9
    $region8: #{tpu_custom_call.1} parent=1 // pred_region
      %s26 = ssub.s32 512, 512
      %27 = vsyncadd [#allocation7], %s26
      %s28 = sshll.u32 [#allocation6], 4
      %s29 = int_to_ptr.vmem [resolvable:$true] %s28
      %34 = dma.hbm_to_vmem [thread:$0]  %s1, 512, %s29, [#allocation7], 128, 128, 8
    $region9: #{tpu_custom_call.1} parent=1 // pred_fallthru
      _
    // Predicated region
    $region10: #{tpu_custom_call.1} parent=1 // pred_check
      _
    $region11: #{tpu_custom_call.1} parent=1 // pred_check_branch
      %36 = sbr.rel (0) target = $region13
    $region12: #{tpu_custom_call.1} parent=1 // pred_region
      _
    $region13: #{tpu_custom_call.1} parent=1 // pred_fallthru
      _
    // Predicated region
    $region14: #{tpu_custom_call.1} parent=1 // pred_check
      _
    $region15: #{tpu_custom_call.1} parent=1 // pred_check_branch
      %38 = sbr.rel (0) target = $region17
    $region16: #{tpu_custom_call.1} parent=1 // pred_region
      %39 = dma.done [#allocation4], 256
    $region17: #{tpu_custom_call.1} parent=1 // pred_fallthru
      _
    // Predicated region
    $region18: #{tpu_custom_call.1} parent=1 // pred_check
      _
    $region19: #{tpu_custom_call.1} parent=1 // pred_check_branch
      %41 = sbr.rel (0) target = $region21
    $region20: #{tpu_custom_call.1} parent=1 // pred_region
      %42 = dma.done [#allocation7], 512
    $region21: #{tpu_custom_call.1} parent=1 // pred_fallthru
      _
    %p43 = scmp.eq.s32.totalorder 0, 0
    // Predicated region
    $region22: #{tpu_custom_call.1} parent=1 // pred_check
      %p44 = pneg %p43
    $region23: #{tpu_custom_call.1} parent=1 // pred_check_branch
      %46 = sbr.rel (%p44) target = $region25
    $region24: #{tpu_custom_call.1} parent=1 // pred_region
      %v47 = vld [vmem:[%s2] sm:$0x1]
      %v49 = vlaneseq
      %v50 = vshrl.u32 %v49, 7
      %v51 = vsub.s32 0, %v50
      %v52 = vrot.slane %v47, %v51
      %vm54 = vcmask 785408
      %55 = vst.msk [vmem:[#allocation2] sm:$0xff] %vm54, %v52
      %56 = vst.msk [vmem:[#allocation2 + $0x8] sm:$0xff] %vm54, %v52
    $region25: #{tpu_custom_call.1} parent=1 // pred_fallthru
      _
    %v57 = vld [vmem:[#allocation2] sm:$0xff]
    %v58 = vld [vmem:[#allocation2 + $0x8] sm:$0xff]
    %v59 = vld [vmem:[#allocation3] sm:$0xff]
    %v60 = vld [vmem:[#allocation3 + $0x8] sm:$0xff]
    %v61 = vld [vmem:[#allocation6] sm:$0xff]
    %v62 = vld [vmem:[#allocation6 + $0x8] sm:$0xff]
    %v63 = vld [vmem:[#allocation6 + $0x10] sm:$0xff]
    %v64 = vld [vmem:[#allocation6 + $0x18] sm:$0xff]
    %vm65 = vcmask 261120
    %v67 = vsel %vm65, %v59, 0
    %v70 = vsel %vm65, %v60, 0
    %72 = vmatprep.subr.mxu0 0.0
    %73 = vmatpush1.msra.mxu0 %v61
    %74 = vmatprep.subr.mxu0 0.0
    %75 = vmatpush1.msra.mxu0 %v62
    %76 = vmatprep.subr.mxu0 0.0
    %77 = vmatpush1.msra.mxu0 %v63
    %78 = vmatprep.subr.mxu0 0.0
    %79 = vmatpush1.msra.mxu0 %v64
    %80 = vmatprep.subr.mxu0 0.0
    %81 = vmatpush1.msra.mxu0 0.0
    %82 = vmatprep.subr.mxu0 0.0
    %83 = vmatpush1.msra.mxu0 0.0
    %84 = vmatprep.subr.mxu0 0.0
    %85 = vmatpush1.msra.mxu0 0.0
    %86 = vmatprep.subr.mxu0 0.0
    %87 = vmatpush1.msra.mxu0 0.0
    %88 = vmatprep.subr.mxu0 0.0
    %89 = vmatpush1.msra.mxu0 0.0
    %90 = vmatprep.subr.mxu0 0.0
    %91 = vmatpush1.msra.mxu0 0.0
    %92 = vmatprep.subr.mxu0 0.0
    %93 = vmatpush1.msra.mxu0 0.0
    %94 = vmatprep.subr.mxu0 0.0
    %95 = vmatpush1.msra.mxu0 0.0
    %96 = vmatprep.subr.mxu0 0.0
    %97 = vmatpush1.msra.mxu0 0.0
    %98 = vmatprep.subr.mxu0 0.0
    %99 = vmatpush1.msra.mxu0 0.0
    %100 = vmatprep.subr.mxu0 0.0
    %101 = vmatpush1.msra.mxu0 0.0
    %102 = vmatprep.subr.mxu0 0.0
    %103 = vmatpush1.msra.mxu0 0.0
    %104 = vmatprep.subr.mxu0 0.0
    %105 = vmatpush1.msra.mxu0 0.0
    %106 = vmatprep.subr.mxu0 0.0
    %107 = vmatpush1.msra.mxu0 0.0
    %108 = vmatprep.subr.mxu0 0.0
    %109 = vmatpush1.msra.mxu0 0.0
    %110 = vmatprep.subr.mxu0 0.0
    %111 = vmatpush1.msra.mxu0 0.0
    %112 = vmatprep.subr.mxu0 0.0
    %113 = vmatpush1.msra.mxu0 0.0
    %114 = vmatprep.subr.mxu0 0.0
    %115 = vmatpush1.msra.mxu0 0.0
    %116 = vmatprep.subr.mxu0 0.0
    %117 = vmatpush1.msra.mxu0 0.0
    %118 = vmatprep.subr.mxu0 0.0
    %119 = vmatpush1.msra.mxu0 0.0
    %120 = vmatprep.subr.mxu0 0.0
    %121 = vmatpush1.msra.mxu0 0.0
    %122 = vmatprep.subr.mxu0 0.0
    %123 = vmatpush1.msra.mxu0 0.0
    %124 = vmatprep.subr.mxu0 0.0
    %125 = vmatpush1.msra.mxu0 0.0
    %126 = vmatprep.subr.mxu0 0.0
    %127 = vmatpush1.msra.mxu0 0.0
    %128 = vmatprep.subr.mxu0 0.0
    %129 = vmatpush1.msra.mxu0 0.0
    %130 = vmatprep.subr.mxu0 0.0
    %131 = vmatpush1.msra.mxu0 0.0
    %132 = vmatprep.subr.mxu0 0.0
    %133 = vmatpush1.msra.mxu0 0.0
    %134 = vmatprep.subr.mxu0 0.0
    %135 = vmatpush1.msra.mxu0 0.0
    %136 = vmatprep.mubr.f32.mxu0 0.0
    %137 = vmatmul.mubr.f32.gmra.mrb[0].mxu0 %v67
    %v138 = vpop.f32.mrb[0].mxu0
    %v139 = vadd.f32 0.0, %v138
    %v140 = vpop.f32.mrb[0].mxu0
    %141 = vmatprep.mubr.f32.mxu0 0.0
    %142 = vmatmul.mubr.f32.gmra.mrb[0].mxu0 %v70
    %v143 = vpop.f32.mrb[0].mxu0
    %v144 = vadd.f32 0.0, %v143
    %v145 = vpop.f32.mrb[0].mxu0
    %146 = vdwg.mxu0
    %v147 = vadd.f32 %v57, %v139
    %v148 = vadd.f32 %v58, %v144
    %vm149 = vcmask 785408
    %150 = vst.msk [vmem:[#allocation2] sm:$0xff] %vm149, %v147
    %151 = vst.msk [vmem:[#allocation2 + $0x8] sm:$0xff] %vm149, %v148
    // Predicated region
    $region26: #{tpu_custom_call.1} parent=1 // pred_check
      %p152 = pneg %p43
    $region27: #{tpu_custom_call.1} parent=1 // pred_check_branch
      %154 = sbr.rel (%p152) target = $region29
    $region28: #{tpu_custom_call.1} parent=1 // pred_region
      %v155 = vld [vmem:[#allocation2] sm:$0xff]
      %v156 = vld [vmem:[#allocation2 + $0x8] sm:$0xff]
      %157 = vst.msk [vmem:[#allocation8] sm:$0xff] %vm149, %v155
      %158 = vst.msk [vmem:[#allocation8 + $0x8] sm:$0xff] %vm149, %v156
    $region29: #{tpu_custom_call.1} parent=1 // pred_fallthru
      _
    // Predicated region
    $region30: #{tpu_custom_call.1} parent=1 // pred_check
      _
    $region31: #{tpu_custom_call.1} parent=1 // pred_check_branch
      %160 = sbr.rel (0) target = $region33
    $region32: #{tpu_custom_call.1} parent=1 // pred_region
      %s162 = ssub.s32 256, 256
      %163 = vsyncadd [#allocation5], %s162
      %s164 = sshll.u32 [#allocation8], 4
      %s165 = int_to_ptr.vmem [resolvable:$true] %s164
      %170 = dma.vmem_to_hbm [thread:$0]  %s165, 256, %s3, [#allocation5], 128, 128, 8
    $region33: #{tpu_custom_call.1} parent=1 // pred_fallthru
      _
    // Predicated region
    $region34: #{tpu_custom_call.1} parent=1 // pred_check
      _
    $region35: #{tpu_custom_call.1} parent=1 // pred_check_branch
      %172 = sbr.rel (0) target = $region37
    $region36: #{tpu_custom_call.1} parent=1 // pred_region
      %173 = dma.done [#allocation5], 256
    $region37: #{tpu_custom_call.1} parent=1 // pred_fallthru
      _
    %174 = vsyncpa [#allocation4], 1
    %175 = vsyncpa [#allocation7], 1
    %176 = vsyncpa [#allocation5], 1

</llo_original>
